<compile_context>
chip_gen: v7x
topology: tpu7x:2x2x1
jax: 0.10.0
libtpu: 0.0.40
codegen_flags: <defaults>
</compile_context>

<pallas_src>
import functools

import jax
import jax.numpy as jnp
from jax.experimental import pallas as pl
from jax.experimental.pallas import tpu as pltpu

_LANES = 128


def _fused_conv1d_relu_kernel(n_filters, x_ref, *refs):
    """Fused (im2col-matmul + bias + ReLU) for all filter sizes.

    x_ref : (R_tile, K_max*C_in)   im2col rows (batch*length folded into M)
    w_i   : (K_max*C_in, C_pad)    zero-padded reshaped conv weight
    b_i   : (1, C_pad)             zero-padded bias
    o_i   : (R_tile, C_pad)        lane-dense output tile
    """
    w_refs = refs[:n_filters]
    b_refs = refs[n_filters:2 * n_filters]
    o_refs = refs[2 * n_filters:]

    xm = x_ref[...]  # load the row block once, reused by every filter size
    for i in range(n_filters):
        # Single MXU push per filter: contraction dim = K_max*C_in (rows of the
        # weight beyond fs*C_in are zero, so they contribute nothing).
        y = jnp.dot(xm, w_refs[i][...], preferred_element_type=jnp.float32)
        y = y + b_refs[i][...]                       # (1, C_pad) broadcast
        o_refs[i][...] = jnp.maximum(y, 0.0).astype(o_refs[i].dtype)


def conv1d_module_forward(x_ncl, params, *, row_tile=256):
    """Forward of the Conv1d module: [relu(conv_fs(x)) for fs in filter_sizes].

    x_ncl : (N, C_in, L) float32
    params: list of (weight (C_out, C_in, fs), bias (C_out,)) — PyTorch layout
    returns list of (N, C_out, L - fs + 1)
    """
    N, C_in, L = x_ncl.shape
    C_out = params[0][0].shape[0]
    filter_sizes = [w.shape[2] for (w, _) in params]
    n_f = len(params)
    K_max = max(filter_sizes)
    KC = K_max * C_in
    c_out_pad = ((C_out + _LANES - 1) // _LANES) * _LANES

    # ---- layout plumbing (plain XLA glue, done once for all filter sizes) ----
    # im2col slab shared by every filter size: for fs <= K_max only the first
    # fs*C_in lanes are "used" (the rest hit zero weight rows).
    x_nlc = jnp.transpose(x_ncl, (0, 2, 1))                       # (N, L, C_in)
    x_pad = jnp.pad(x_nlc, ((0, 0), (0, K_max - 1), (0, 0)))
    x_cat = jnp.concatenate([x_pad[:, k:k + L, :] for k in range(K_max)],
                            axis=-1)                              # (N, L, KC)
    x_rows = x_cat.reshape(N * L, KC)

    # weights -> (K_max*C_in, C_pad) with w2[k*C_in + c, o] = weight[o, c, k];
    # rows >= fs*C_in and lanes >= C_out are zero padding.
    w_list, b_list = [], []
    for (w, b) in params:
        fs = w.shape[2]
        w_kio = jnp.transpose(w, (2, 1, 0)).reshape(fs * C_in, C_out)
        w_padded = jnp.zeros((KC, c_out_pad), dtype=w.dtype)
        w_padded = w_padded.at[:fs * C_in, :C_out].set(w_kio)
        w_list.append(w_padded)
        b_padded = jnp.zeros((1, c_out_pad), dtype=b.dtype).at[0, :C_out].set(b)
        b_list.append(b_padded)

    total_rows = N * L
    r_tile = min(total_rows, row_tile)   # cap keeps the f32 accumulator small
    grid = (pl.cdiv(total_rows, r_tile),)

    in_specs = [pl.BlockSpec((r_tile, KC), lambda r: (r, 0))]
    in_specs += [pl.BlockSpec((KC, c_out_pad), lambda r: (0, 0))] * n_f
    in_specs += [pl.BlockSpec((1, c_out_pad), lambda r: (0, 0))] * n_f
    out_specs = tuple(
        pl.BlockSpec((r_tile, c_out_pad), lambda r: (r, 0)) for _ in range(n_f))
    out_shape = tuple(
        jax.ShapeDtypeStruct((total_rows, c_out_pad), x_ncl.dtype)
        for _ in range(n_f))

    kernel = functools.partial(_fused_conv1d_relu_kernel, n_f)

    outs = pl.pallas_call(
        kernel,
        out_shape=out_shape,
        grid_spec=pltpu.PrefetchScalarGridSpec(
            num_scalar_prefetch=0,
            grid=grid,
            in_specs=in_specs,
            out_specs=out_specs,
        ),
        compiler_params=pltpu.CompilerParams(
            dimension_semantics=("parallel",)),
    )(x_rows, *w_list, *b_list)
    if n_f == 1:
        outs = (outs,)

    # slice padded lanes / invalid tail rows back to PyTorch shapes
    results = []
    for fs, y in zip(filter_sizes, outs):
        L_out = L - fs + 1
        y_nlc = y.reshape(N, L, c_out_pad)[:, :L_out, :C_out]
        results.append(jnp.transpose(y_nlc, (0, 2, 1)))           # (N, C_out, L_out)
    return results


def init_conv1d_params(key, in_channels, out_channels, filter_sizes):
    """Matches the module's init_params(): xavier_uniform_ weights, bias=0.1."""
    params = []
    for fs in filter_sizes:
        key, sub = jax.random.split(key)
        fan_in = in_channels * fs
        fan_out = out_channels * fs
        bound = (6.0 / (fan_in + fan_out)) ** 0.5
        w = jax.random.uniform(sub, (out_channels, in_channels, fs),
                               minval=-bound, maxval=bound, dtype=jnp.float32)
        b = jnp.full((out_channels,), 0.1, dtype=jnp.float32)
        params.append((w, b))
    return params


if __name__ == "__main__":
    batch, in_channels, out_channels, seq_len = 2, 4, 8, 16
    filter_sizes = (3, 5)

    key = jax.random.PRNGKey(0)
    key, xkey = jax.random.split(key)
    x = jax.random.normal(xkey, (batch, in_channels, seq_len), dtype=jnp.float32)

    params = init_conv1d_params(key, in_channels, out_channels, filter_sizes)

    outs = conv1d_module_forward(x, params)
    outs = [jax.block_until_ready(o) for o in outs]

    # Reference check in plain JAX.
    for (w, b), o, fs in zip(params, outs, filter_sizes):
        ref = jax.lax.conv_general_dilated(
            x, w, window_strides=(1,), padding="VALID",
            dimension_numbers=("NCH", "OIH", "NCH"))
        ref = jnp.maximum(ref + b[None, :, None], 0.0)
        assert o.shape == (batch, out_channels, seq_len - fs + 1), o.shape
        assert jnp.allclose(o, ref, atol=1e-5, rtol=1e-5), (
            f"mismatch for filter size {fs}")

    print("KERNEL_OK")
</pallas_src>

<mosaic_0001>
module attributes {stable_mosaic.version = 11 : i64} {
  func.func @_fused_conv1d_relu_kernel(%arg0: i32, %arg1: memref<32x20xf32, #tpu.memory_space<vmem>>, %arg2: memref<20x128xf32, #tpu.memory_space<vmem>>, %arg3: memref<20x128xf32, #tpu.memory_space<vmem>>, %arg4: memref<1x128xf32, #tpu.memory_space<vmem>>, %arg5: memref<1x128xf32, #tpu.memory_space<vmem>>, %arg6: memref<32x128xf32, #tpu.memory_space<vmem>>, %arg7: memref<32x128xf32, #tpu.memory_space<vmem>>) attributes {dimension_semantics = [#tpu.dimension_semantics<parallel>], iteration_bounds = array<i64: 1>, scalar_prefetch = 0 : i64, scratch_operands = 0 : i64, tpu.core_type = #tpu.core_type<tc>, window_params = [{transform_indices = @transform_0, window_bounds = array<i64: 32, 20>}, {pipeline_mode = #tpu.pipeline_mode<synchronous>, transform_indices = @transform_1, window_bounds = array<i64: 20, 128>}, {pipeline_mode = #tpu.pipeline_mode<synchronous>, transform_indices = @transform_2, window_bounds = array<i64: 20, 128>}, {pipeline_mode = #tpu.pipeline_mode<synchronous>, transform_indices = @transform_3, window_bounds = array<i64: 1, 128>}, {pipeline_mode = #tpu.pipeline_mode<synchronous>, transform_indices = @transform_4, window_bounds = array<i64: 1, 128>}, {transform_indices = @transform_5, window_bounds = array<i64: 32, 128>}, {transform_indices = @transform_6, window_bounds = array<i64: 32, 128>}]} {
    %c0 = arith.constant 0 : index
    %c0_0 = arith.constant 0 : index
    %0 = vector.load %arg1[%c0, %c0_0] : memref<32x20xf32, #tpu.memory_space<vmem>>, vector<32x20xf32>
    %c0_1 = arith.constant 0 : index
    %c0_2 = arith.constant 0 : index
    %1 = vector.load %arg2[%c0_1, %c0_2] : memref<20x128xf32, #tpu.memory_space<vmem>>, vector<20x128xf32>
    %cst = arith.constant dense<0.000000e+00> : vector<32x128xf32>
    %2 = tpu.matmul %0, %1, %cst {dimension_numbers = #tpu.dot_dimension_numbers<[1], [0], [0], [1], [0, 0, 1, 1], [], []>} : vector<32x20xf32>, vector<20x128xf32>, vector<32x128xf32> -> vector<32x128xf32>
    %c0_3 = arith.constant 0 : index
    %c0_4 = arith.constant 0 : index
    %3 = vector.load %arg4[%c0_3, %c0_4] : memref<1x128xf32, #tpu.memory_space<vmem>>, vector<1x128xf32>
    %4 = vector.broadcast %3 : vector<1x128xf32> to vector<32x128xf32>
    %5 = arith.addf %2, %4 : vector<32x128xf32>
    %cst_5 = arith.constant 0.000000e+00 : f32
    %6 = vector.broadcast %cst_5 : f32 to vector<32x128xf32>
    %7 = arith.maximumf %5, %6 : vector<32x128xf32>
    %c0_6 = arith.constant 0 : index
    %c0_7 = arith.constant 0 : index
    %8 = vector.load %arg6[%c0_6, %c0_7] : memref<32x128xf32, #tpu.memory_space<vmem>>, vector<32x128xf32>
    tpu.vector_store %arg6[%c0_6, %c0_7], %7 {strides = array<i32>} : memref<32x128xf32, #tpu.memory_space<vmem>>, vector<32x128xf32>,
    %c0_8 = arith.constant 0 : index
    %c0_9 = arith.constant 0 : index
    %9 = vector.load %arg3[%c0_8, %c0_9] : memref<20x128xf32, #tpu.memory_space<vmem>>, vector<20x128xf32>
    %cst_10 = arith.constant dense<0.000000e+00> : vector<32x128xf32>
    %10 = tpu.matmul %0, %9, %cst_10 {dimension_numbers = #tpu.dot_dimension_numbers<[1], [0], [0], [1], [0, 0, 1, 1], [], []>} : vector<32x20xf32>, vector<20x128xf32>, vector<32x128xf32> -> vector<32x128xf32>
    %c0_11 = arith.constant 0 : index
    %c0_12 = arith.constant 0 : index
    %11 = vector.load %arg5[%c0_11, %c0_12] : memref<1x128xf32, #tpu.memory_space<vmem>>, vector<1x128xf32>
    %12 = vector.broadcast %11 : vector<1x128xf32> to vector<32x128xf32>
    %13 = arith.addf %10, %12 : vector<32x128xf32>
    %cst_13 = arith.constant 0.000000e+00 : f32
    %14 = vector.broadcast %cst_13 : f32 to vector<32x128xf32>
    %15 = arith.maximumf %13, %14 : vector<32x128xf32>
    %c0_14 = arith.constant 0 : index
    %c0_15 = arith.constant 0 : index
    %16 = vector.load %arg7[%c0_14, %c0_15] : memref<32x128xf32, #tpu.memory_space<vmem>>, vector<32x128xf32>
    tpu.vector_store %arg7[%c0_14, %c0_15], %15 {strides = array<i32>} : memref<32x128xf32, #tpu.memory_space<vmem>>, vector<32x128xf32>,
    return
  }
  func.func @transform_0(%arg0: i32) -> (i32, i32) {
    %c0_i32 = arith.constant 0 : i32
    %c0_i32_0 = arith.constant 0 : i32
    return %arg0, %c0_i32 : i32, i32
  }
  func.func @transform_1(%arg0: i32) -> (i32, i32) {
    %c0_i32 = arith.constant 0 : i32
    %c0_i32_0 = arith.constant 0 : i32
    %c0_i32_1 = arith.constant 0 : i32
    return %c0_i32, %c0_i32_0 : i32, i32
  }
  func.func @transform_2(%arg0: i32) -> (i32, i32) {
    %c0_i32 = arith.constant 0 : i32
    %c0_i32_0 = arith.constant 0 : i32
    %c0_i32_1 = arith.constant 0 : i32
    return %c0_i32, %c0_i32_0 : i32, i32
  }
  func.func @transform_3(%arg0: i32) -> (i32, i32) {
    %c0_i32 = arith.constant 0 : i32
    %c0_i32_0 = arith.constant 0 : i32
    %c0_i32_1 = arith.constant 0 : i32
    return %c0_i32, %c0_i32_0 : i32, i32
  }
  func.func @transform_4(%arg0: i32) -> (i32, i32) {
    %c0_i32 = arith.constant 0 : i32
    %c0_i32_0 = arith.constant 0 : i32
    %c0_i32_1 = arith.constant 0 : i32
    return %c0_i32, %c0_i32_0 : i32, i32
  }
  func.func @transform_5(%arg0: i32) -> (i32, i32) {
    %c0_i32 = arith.constant 0 : i32
    %c0_i32_0 = arith.constant 0 : i32
    return %arg0, %c0_i32 : i32, i32
  }
  func.func @transform_6(%arg0: i32) -> (i32, i32) {
    %c0_i32 = arith.constant 0 : i32
    %c0_i32_0 = arith.constant 0 : i32
    return %arg0, %c0_i32 : i32, i32
  }
}

</mosaic_0001>

<llo_original>
// kernel: tpu_custom_call.1
$region0: #{tpu_custom_call.1}
  #allocation0 [shape = 'u32[]', space=smem, size = 0x4, offset = 0x4, fixed_abs, tag = 'smem constant byte address 0x4 - core index']
  #allocation1 [shape = 'u32[144,128]{1,0:T(1,128)}', space=vmem, size = 0x12000, scoped, tag = 'internal scratch']
  %s0 = inlined_call_operand.vmem [shape: f32[32,20], index: 0, kind: input, shape index: {}]
  %s1 = inlined_call_operand.vmem [shape: f32[20,128], index: 1, kind: input, shape index: {}]
  %s2 = inlined_call_operand.vmem [shape: f32[20,128], index: 2, kind: input, shape index: {}]
  %s3 = inlined_call_operand.vmem [shape: f32[1,128], index: 3, kind: input, shape index: {}]
  %s4 = inlined_call_operand.vmem [shape: f32[1,128], index: 4, kind: input, shape index: {}]
  %s5 = inlined_call_operand.hbm [shape: f32[32,128], index: 5, kind: output, shape index: {0}]
  %s6 = inlined_call_operand.hbm [shape: f32[32,128], index: 6, kind: output, shape index: {1}]
  %7 = xla_tuple %s5, %s6
  %s8 = sld [smem:[#allocation0]]
  $region38: #{tpu_custom_call.1} parent=0
    _
  %s10 = ssub.s32 1, %s8
  %s11 = scalar_select 0, %s10, %s8
  $region1: #{tpu_custom_call.1} parent=0
    #allocation2 [shape = 'u8[16384]{0}', space=vmem, size = 0x4000, scoped, tag = 'output window, operand 0, single buffered']
    #allocation3 [shape = 's32[1]{0}', space=sflag, size = 0x4, scoped, tag = 'scoped memory for tpu_custom_call.1']
    #allocation4 [shape = 'u8[16384]{0}', space=vmem, size = 0x4000, scoped, tag = 'output window, operand 1, single buffered']
    #allocation5 [shape = 's32[1]{0}', space=sflag, size = 0x4, scoped, tag = 'scoped memory for tpu_custom_call.1']
    %12 = vsyncpa [#allocation3], 0
    %13 = vsyncpa [#allocation5], 0
    // Predicated region
    $region2: #{tpu_custom_call.1} parent=1 // pred_check
      _
    $region3: #{tpu_custom_call.1} parent=1 // pred_check_branch
      %15 = sbr.rel (0) target = $region5
    $region4: #{tpu_custom_call.1} parent=1 // pred_region
      _
    $region5: #{tpu_custom_call.1} parent=1 // pred_fallthru
      _
    // Predicated region
    $region6: #{tpu_custom_call.1} parent=1 // pred_check
      _
    $region7: #{tpu_custom_call.1} parent=1 // pred_check_branch
      %17 = sbr.rel (0) target = $region9
    $region8: #{tpu_custom_call.1} parent=1 // pred_region
      _
    $region9: #{tpu_custom_call.1} parent=1 // pred_fallthru
      _
    // Predicated region
    $region10: #{tpu_custom_call.1} parent=1 // pred_check
      _
    $region11: #{tpu_custom_call.1} parent=1 // pred_check_branch
      %19 = sbr.rel (0) target = $region13
    $region12: #{tpu_custom_call.1} parent=1 // pred_region
      _
    $region13: #{tpu_custom_call.1} parent=1 // pred_fallthru
      _
    // Predicated region
    $region14: #{tpu_custom_call.1} parent=1 // pred_check
      _
    $region15: #{tpu_custom_call.1} parent=1 // pred_check_branch
      %21 = sbr.rel (0) target = $region17
    $region16: #{tpu_custom_call.1} parent=1 // pred_region
      _
    $region17: #{tpu_custom_call.1} parent=1 // pred_fallthru
      _
    // Predicated region
    $region18: #{tpu_custom_call.1} parent=1 // pred_check
      _
    $region19: #{tpu_custom_call.1} parent=1 // pred_check_branch
      %23 = sbr.rel (0) target = $region21
    $region20: #{tpu_custom_call.1} parent=1 // pred_region
      _
    $region21: #{tpu_custom_call.1} parent=1 // pred_fallthru
      _
    %v24 = vld [vmem:[%s0] sm:$0xff]
    %v25 = vld [vmem:[%s0 + $0x8] sm:$0xff]
    %v26 = vld [vmem:[%s0 + $0x10] sm:$0xff]
    %v27 = vld [vmem:[%s0 + $0x18] sm:$0xff]
    %v28 = vld [vmem:[%s1] sm:$0xff]
    %v29 = vld [vmem:[%s1 + $0x8] sm:$0xff]
    %v30 = vld [vmem:[%s1 + $0x10] sm:$0xf]
    %v31 = vld [vmem:[%s3] sm:$0x1]
    %v33 = vlaneseq
    %v34 = vshrl.u32 %v33, 7
    %v35 = vsub.s32 0, %v34
    %v36 = vrot.slane %v31, %v35
    %vm38 = vcmask 162816
    %v40 = vsel %vm38, %v24, 0
    %v43 = vsel %vm38, %v25, 0
    %v46 = vsel %vm38, %v26, 0
    %v49 = vsel %vm38, %v27, 0
    %vm51 = vcmask 1043456
    %v53 = vsel %vm51, %v30, 0
    %55 = vmatprep.subr.mxu0 0.0
    %56 = vmatpush1.msra.mxu0 %v28
    %57 = vmatprep.subr.mxu0 0.0
    %58 = vmatpush1.msra.mxu0 %v29
    %59 = vmatprep.subr.mxu0 0.0
    %60 = vmatpush1.msra.mxu0 %v53
    %61 = vmatprep.subr.mxu0 0.0
    %62 = vmatpush1.msra.mxu0 0.0
    %63 = vmatprep.subr.mxu0 0.0
    %64 = vmatpush1.msra.mxu0 0.0
    %65 = vmatprep.subr.mxu0 0.0
    %66 = vmatpush1.msra.mxu0 0.0
    %67 = vmatprep.subr.mxu0 0.0
    %68 = vmatpush1.msra.mxu0 0.0
    %69 = vmatprep.subr.mxu0 0.0
    %70 = vmatpush1.msra.mxu0 0.0
    %71 = vmatprep.subr.mxu0 0.0
    %72 = vmatpush1.msra.mxu0 0.0
    %73 = vmatprep.subr.mxu0 0.0
    %74 = vmatpush1.msra.mxu0 0.0
    %75 = vmatprep.subr.mxu0 0.0
    %76 = vmatpush1.msra.mxu0 0.0
    %77 = vmatprep.subr.mxu0 0.0
    %78 = vmatpush1.msra.mxu0 0.0
    %79 = vmatprep.subr.mxu0 0.0
    %80 = vmatpush1.msra.mxu0 0.0
    %81 = vmatprep.subr.mxu0 0.0
    %82 = vmatpush1.msra.mxu0 0.0
    %83 = vmatprep.subr.mxu0 0.0
    %84 = vmatpush1.msra.mxu0 0.0
    %85 = vmatprep.subr.mxu0 0.0
    %86 = vmatpush1.msra.mxu0 0.0
    %87 = vmatprep.subr.mxu0 0.0
    %88 = vmatpush1.msra.mxu0 0.0
    %89 = vmatprep.subr.mxu0 0.0
    %90 = vmatpush1.msra.mxu0 0.0
    %91 = vmatprep.subr.mxu0 0.0
    %92 = vmatpush1.msra.mxu0 0.0
    %93 = vmatprep.subr.mxu0 0.0
    %94 = vmatpush1.msra.mxu0 0.0
    %95 = vmatprep.subr.mxu0 0.0
    %96 = vmatpush1.msra.mxu0 0.0
    %97 = vmatprep.subr.mxu0 0.0
    %98 = vmatpush1.msra.mxu0 0.0
    %99 = vmatprep.subr.mxu0 0.0
    %100 = vmatpush1.msra.mxu0 0.0
    %101 = vmatprep.subr.mxu0 0.0
    %102 = vmatpush1.msra.mxu0 0.0
    %103 = vmatprep.subr.mxu0 0.0
    %104 = vmatpush1.msra.mxu0 0.0
    %105 = vmatprep.subr.mxu0 0.0
    %106 = vmatpush1.msra.mxu0 0.0
    %107 = vmatprep.subr.mxu0 0.0
    %108 = vmatpush1.msra.mxu0 0.0
    %109 = vmatprep.subr.mxu0 0.0
    %110 = vmatpush1.msra.mxu0 0.0
    %111 = vmatprep.subr.mxu0 0.0
    %112 = vmatpush1.msra.mxu0 0.0
    %113 = vmatprep.subr.mxu0 0.0
    %114 = vmatpush1.msra.mxu0 0.0
    %115 = vmatprep.subr.mxu0 0.0
    %116 = vmatpush1.msra.mxu0 0.0
    %117 = vmatprep.subr.mxu0 0.0
    %118 = vmatpush1.msra.mxu0 0.0
    %119 = vmatprep.mubr.f32.mxu0 0.0
    %120 = vmatmul.mubr.f32.gmra.mrb[0].mxu0 %v40
    %v121 = vpop.f32.mrb[0].mxu0
    %v122 = vadd.f32 %v36, %v121
    %v123 = vpop.f32.mrb[0].mxu0
    %124 = vmatprep.mubr.f32.mxu0 0.0
    %125 = vmatmul.mubr.f32.gmra.mrb[0].mxu0 %v43
    %v126 = vpop.f32.mrb[0].mxu0
    %v127 = vadd.f32 %v36, %v126
    %v128 = vpop.f32.mrb[0].mxu0
    %129 = vmatprep.mubr.f32.mxu0 0.0
    %130 = vmatmul.mubr.f32.gmra.mrb[0].mxu0 %v46
    %v131 = vpop.f32.mrb[0].mxu0
    %v132 = vadd.f32 %v36, %v131
    %v133 = vpop.f32.mrb[0].mxu0
    %134 = vmatprep.mubr.f32.mxu0 0.0
    %135 = vmatmul.mubr.f32.gmra.mrb[0].mxu0 %v49
    %v136 = vpop.f32.mrb[0].mxu0
    %v137 = vadd.f32 %v36, %v136
    %v138 = vpop.f32.mrb[0].mxu0
    %139 = vdwg.mxu0
    %v140 = vmax.f32 %v122, 0.0
    %v141 = vmax.f32 %v127, 0.0
    %v142 = vmax.f32 %v132, 0.0
    %v143 = vmax.f32 %v137, 0.0
    %144 = vst [vmem:[#allocation2] sm:$0xff] %v140
    %145 = vst [vmem:[#allocation2 + $0x8] sm:$0xff] %v141
    %146 = vst [vmem:[#allocation2 + $0x10] sm:$0xff] %v142
    %147 = vst [vmem:[#allocation2 + $0x18] sm:$0xff] %v143
    %v148 = vld [vmem:[%s2] sm:$0xff]
    %v149 = vld [vmem:[%s2 + $0x8] sm:$0xff]
    %v150 = vld [vmem:[%s2 + $0x10] sm:$0xf]
    %v151 = vld [vmem:[%s4] sm:$0x1]
    %v153 = vlaneseq
    %v154 = vshrl.u32 %v153, 7
    %v155 = vsub.s32 0, %v154
    %v156 = vrot.slane %v151, %v155
    %v159 = vsel %vm51, %v150, 0
    %161 = vmatprep.subr.mxu0 0.0
    %162 = vmatpush1.msra.mxu0 %v148
    %163 = vmatprep.subr.mxu0 0.0
    %164 = vmatpush1.msra.mxu0 %v149
    %165 = vmatprep.subr.mxu0 0.0
    %166 = vmatpush1.msra.mxu0 %v159
    %167 = vmatprep.subr.mxu0 0.0
    %168 = vmatpush1.msra.mxu0 0.0
    %169 = vmatprep.subr.mxu0 0.0
    %170 = vmatpush1.msra.mxu0 0.0
    %171 = vmatprep.subr.mxu0 0.0
    %172 = vmatpush1.msra.mxu0 0.0
    %173 = vmatprep.subr.mxu0 0.0
    %174 = vmatpush1.msra.mxu0 0.0
    %175 = vmatprep.subr.mxu0 0.0
    %176 = vmatpush1.msra.mxu0 0.0
    %177 = vmatprep.subr.mxu0 0.0
    %178 = vmatpush1.msra.mxu0 0.0
    %179 = vmatprep.subr.mxu0 0.0
    %180 = vmatpush1.msra.mxu0 0.0
    %181 = vmatprep.subr.mxu0 0.0
    %182 = vmatpush1.msra.mxu0 0.0
    %183 = vmatprep.subr.mxu0 0.0
    %184 = vmatpush1.msra.mxu0 0.0
    %185 = vmatprep.subr.mxu0 0.0
    %186 = vmatpush1.msra.mxu0 0.0
    %187 = vmatprep.subr.mxu0 0.0
    %188 = vmatpush1.msra.mxu0 0.0
    %189 = vmatprep.subr.mxu0 0.0
    %190 = vmatpush1.msra.mxu0 0.0
    %191 = vmatprep.subr.mxu0 0.0
    %192 = vmatpush1.msra.mxu0 0.0
    %193 = vmatprep.subr.mxu0 0.0
    %194 = vmatpush1.msra.mxu0 0.0
    %195 = vmatprep.subr.mxu0 0.0
    %196 = vmatpush1.msra.mxu0 0.0
    %197 = vmatprep.subr.mxu0 0.0
    %198 = vmatpush1.msra.mxu0 0.0
    %199 = vmatprep.subr.mxu0 0.0
    %200 = vmatpush1.msra.mxu0 0.0
    %201 = vmatprep.subr.mxu0 0.0
    %202 = vmatpush1.msra.mxu0 0.0
    %203 = vmatprep.subr.mxu0 0.0
    %204 = vmatpush1.msra.mxu0 0.0
    %205 = vmatprep.subr.mxu0 0.0
    %206 = vmatpush1.msra.mxu0 0.0
    %207 = vmatprep.subr.mxu0 0.0
    %208 = vmatpush1.msra.mxu0 0.0
    %209 = vmatprep.subr.mxu0 0.0
    %210 = vmatpush1.msra.mxu0 0.0
    %211 = vmatprep.subr.mxu0 0.0
    %212 = vmatpush1.msra.mxu0 0.0
    %213 = vmatprep.subr.mxu0 0.0
    %214 = vmatpush1.msra.mxu0 0.0
    %215 = vmatprep.subr.mxu0 0.0
    %216 = vmatpush1.msra.mxu0 0.0
    %217 = vmatprep.subr.mxu0 0.0
    %218 = vmatpush1.msra.mxu0 0.0
    %219 = vmatprep.subr.mxu0 0.0
    %220 = vmatpush1.msra.mxu0 0.0
    %221 = vmatprep.subr.mxu0 0.0
    %222 = vmatpush1.msra.mxu0 0.0
    %223 = vmatprep.subr.mxu0 0.0
    %224 = vmatpush1.msra.mxu0 0.0
    %225 = vmatprep.mubr.f32.mxu0 0.0
    %226 = vmatmul.mubr.f32.gmra.mrb[0].mxu0 %v40
    %v227 = vpop.f32.mrb[0].mxu0
    %v228 = vadd.f32 %v156, %v227
    %v229 = vpop.f32.mrb[0].mxu0
    %230 = vmatprep.mubr.f32.mxu0 0.0
    %231 = vmatmul.mubr.f32.gmra.mrb[0].mxu0 %v43
    %v232 = vpop.f32.mrb[0].mxu0
    %v233 = vadd.f32 %v156, %v232
    %v234 = vpop.f32.mrb[0].mxu0
    %235 = vmatprep.mubr.f32.mxu0 0.0
    %236 = vmatmul.mubr.f32.gmra.mrb[0].mxu0 %v46
    %v237 = vpop.f32.mrb[0].mxu0
    %v238 = vadd.f32 %v156, %v237
    %v239 = vpop.f32.mrb[0].mxu0
    %240 = vmatprep.mubr.f32.mxu0 0.0
    %241 = vmatmul.mubr.f32.gmra.mrb[0].mxu0 %v49
    %v242 = vpop.f32.mrb[0].mxu0
    %v243 = vadd.f32 %v156, %v242
    %v244 = vpop.f32.mrb[0].mxu0
    %245 = vdwg.mxu0
    %v246 = vmax.f32 %v228, 0.0
    %v247 = vmax.f32 %v233, 0.0
    %v248 = vmax.f32 %v238, 0.0
    %v249 = vmax.f32 %v243, 0.0
    %250 = vst [vmem:[#allocation4] sm:$0xff] %v246
    %251 = vst [vmem:[#allocation4 + $0x8] sm:$0xff] %v247
    %252 = vst [vmem:[#allocation4 + $0x10] sm:$0xff] %v248
    %253 = vst [vmem:[#allocation4 + $0x18] sm:$0xff] %v249
    // Predicated region
    $region22: #{tpu_custom_call.1} parent=1 // pred_check
      _
    $region23: #{tpu_custom_call.1} parent=1 // pred_check_branch
      %255 = sbr.rel (0) target = $region25
    $region24: #{tpu_custom_call.1} parent=1 // pred_region
      %s257 = ssub.s32 512, 512
      %258 = vsyncadd [#allocation3], %s257
      %s259 = sshll.u32 [#allocation2], 4
      %s260 = int_to_ptr.vmem [resolvable:$true] %s259
      %265 = dma.vmem_to_hbm [thread:$0]  %s260, 512, %s5, [#allocation3], 128, 128, 8
    $region25: #{tpu_custom_call.1} parent=1 // pred_fallthru
      _
    // Predicated region
    $region26: #{tpu_custom_call.1} parent=1 // pred_check
      _
    $region27: #{tpu_custom_call.1} parent=1 // pred_check_branch
      %267 = sbr.rel (0) target = $region29
    $region28: #{tpu_custom_call.1} parent=1 // pred_region
      %s269 = ssub.s32 512, 512
      %270 = vsyncadd [#allocation5], %s269
      %s271 = sshll.u32 [#allocation4], 4
      %s272 = int_to_ptr.vmem [resolvable:$true] %s271
      %277 = dma.vmem_to_hbm [thread:$0]  %s272, 512, %s6, [#allocation5], 128, 128, 8
    $region29: #{tpu_custom_call.1} parent=1 // pred_fallthru
      _
    // Predicated region
    $region30: #{tpu_custom_call.1} parent=1 // pred_check
      _
    $region31: #{tpu_custom_call.1} parent=1 // pred_check_branch
      %279 = sbr.rel (0) target = $region33
    $region32: #{tpu_custom_call.1} parent=1 // pred_region
      %280 = dma.done [#allocation3], 512
    $region33: #{tpu_custom_call.1} parent=1 // pred_fallthru
      _
    // Predicated region
    $region34: #{tpu_custom_call.1} parent=1 // pred_check
      _
    $region35: #{tpu_custom_call.1} parent=1 // pred_check_branch
      %282 = sbr.rel (0) target = $region37
    $region36: #{tpu_custom_call.1} parent=1 // pred_region
      %283 = dma.done [#allocation5], 512
    $region37: #{tpu_custom_call.1} parent=1 // pred_fallthru
      _
    %284 = vsyncpa [#allocation3], 1
    %285 = vsyncpa [#allocation5], 1

</llo_original>
